<compile_context>
chip_gen: v5e
topology: v5e:2x2
jax: 0.10.0
libtpu: 0.0.40
codegen_flags: <defaults>
</compile_context>

<pallas_src>
import functools

import jax
import jax.numpy as jnp
import numpy as np
from jax.experimental import pallas as pl
from jax.experimental.pallas import tpu as pltpu


def _repvgg_kernel(p_ref, w_ref, b_ref, o_ref, *, C_out):
    """Fused RepVggBlock forward for one batch element.

    p_ref : (1, 9*C_in, H*W)   im2col patches (contraction dim on sublanes)
    w_ref : (2*C_out, 9*C_in)  [w3 * s3 ; w1 * s1 (center tap only)]
    b_ref : (2*C_out, 1)       folded BN biases [b3 ; b1]
    o_ref : (1, C_out, H*W)    channels-first output, H*W lane-dense
    """
    # One fat MXU contraction computes both branches at once (K = 9*C_in).
    acc = jnp.dot(w_ref[...], p_ref[0],
                  preferred_element_type=jnp.float32)        # (2*C_out, H*W)

    # Folded-BN bias + per-branch SiLU, both branches in the same vregs.
    y = acc + b_ref[...]
    y = y * jax.nn.sigmoid(y)

    # Branch sum + final SiLU.
    z = y[:C_out, :] + y[C_out:, :]
    z = z * jax.nn.sigmoid(z)
    o_ref[0] = z.astype(o_ref.dtype)


def _fold_bn(gamma, beta, mean, var, eps):
    scale = gamma / jnp.sqrt(var + eps)
    bias = beta - mean * scale
    return scale.astype(jnp.float32), bias.astype(jnp.float32)


def repvgg_block_forward(x_nchw, w3_oihw, w1_oihw, bn3, bn1, eps=1e-5):
    """RepVggBlock forward. x_nchw: (N, C_in, H, W) -> (N, C_out, H, W)."""
    N, C_in, H, W = x_nchw.shape
    C_out = w3_oihw.shape[0]
    HW = H * W

    # --- im2col in the wrapper: (N, 9*C_in, H*W); contraction idx = tap*C_in + c
    xpad = jnp.pad(x_nchw, ((0, 0), (0, 0), (1, 1), (1, 1)))
    taps = [xpad[:, :, dy:dy + H, dx:dx + W]
            for dy in range(3) for dx in range(3)]            # 9 x (N, C_in, H, W)
    patches = jnp.stack(taps, axis=1).reshape(N, 9 * C_in, HW).astype(jnp.float32)
    # TODO(synk): for large feature maps (v7x's 64 MiB VMEM) tile H*W with a
    # 1-row halo inside the kernel instead of materializing full im2col in HBM.

    # --- fold BN scale into the conv weights; kernel only adds bias.
    s3, b3 = _fold_bn(*bn3, eps)
    s1, b1 = _fold_bn(*bn1, eps)

    # 3x3 weights: OIHW -> (C_out, 3, 3, C_in) -> (C_out, 9*C_in), matching the
    # patch contraction-index layout tap*C_in + c.
    w3 = jnp.transpose(w3_oihw, (0, 2, 3, 1)).reshape(C_out, 9 * C_in)
    # 1x1 weights occupy only the center tap (tap index 4).
    w1c = w1_oihw[:, :, 0, 0]                                  # (C_out, C_in)
    w1 = jnp.pad(w1c, ((0, 0), (4 * C_in, 4 * C_in)))          # (C_out, 9*C_in)

    w_big = jnp.concatenate([w3 * s3[:, None], w1 * s1[:, None]],
                            axis=0).astype(jnp.float32)        # (2*C_out, 9*C_in)
    b_big = jnp.concatenate([b3, b1], axis=0)[:, None]         # (2*C_out, 1)

    kernel = functools.partial(_repvgg_kernel, C_out=C_out)

    out = pl.pallas_call(
        kernel,
        out_shape=jax.ShapeDtypeStruct((N, C_out, HW), x_nchw.dtype),
        grid_spec=pltpu.PrefetchScalarGridSpec(
            num_scalar_prefetch=0,
            grid=(N,),
            in_specs=[
                pl.BlockSpec((1, 9 * C_in, HW), lambda n: (n, 0, 0)),
                pl.BlockSpec((2 * C_out, 9 * C_in), lambda n: (0, 0)),
                pl.BlockSpec((2 * C_out, 1), lambda n: (0, 0)),
            ],
            out_specs=pl.BlockSpec((1, C_out, HW), lambda n: (n, 0, 0)),
        ),
        compiler_params=pltpu.CompilerParams(
            dimension_semantics=("parallel",),   # batch elems independent -> megacore on v7x
            vmem_limit_bytes=32 * 1024 * 1024,
        ),
    )(patches, w_big, b_big)

    return out.reshape(N, C_out, H, W)


# ----------------------------- reference (plain JAX) -----------------------------
def _silu(v):
    return v * jax.nn.sigmoid(v)


def _ref_forward(x_nchw, w3_oihw, w1_oihw, bn3, bn1, eps=1e-5):
    x = jnp.transpose(x_nchw, (0, 2, 3, 1))
    w3 = jnp.transpose(w3_oihw, (2, 3, 1, 0))
    w1 = jnp.transpose(w1_oihw, (2, 3, 1, 0))
    dn = ("NHWC", "HWIO", "NHWC")
    c3 = jax.lax.conv_general_dilated(x, w3, (1, 1), "SAME", dimension_numbers=dn)
    c1 = jax.lax.conv_general_dilated(x, w1, (1, 1), "VALID", dimension_numbers=dn)
    s3, b3 = _fold_bn(*bn3, eps)
    s1, b1 = _fold_bn(*bn1, eps)
    y3 = _silu(c3 * s3 + b3)
    y1 = _silu(c1 * s1 + b1)
    y = _silu(y3 + y1)
    return jnp.transpose(y, (0, 3, 1, 2))


def _xavier_uniform(key, shape, gain):
    # PyTorch xavier_uniform_ on an OIHW conv weight.
    c_out, c_in, kh, kw = shape
    fan_in = c_in * kh * kw
    fan_out = c_out * kh * kw
    bound = gain * np.sqrt(6.0 / (fan_in + fan_out))
    return jax.random.uniform(key, shape, jnp.float32, -bound, bound)


if __name__ == "__main__":
    key = jax.random.PRNGKey(0)
    k_x, k_w3, k_w1 = jax.random.split(key, 3)

    N, C_in, H, W = 2, 4, 16, 16
    C_out = 8
    x = jax.random.normal(k_x, (N, C_in, H, W), jnp.float32)

    gain = np.sqrt(2.0)  # nn.init.calculate_gain('relu')
    w3 = _xavier_uniform(k_w3, (C_out, C_in, 3, 3), gain)
    w1 = _xavier_uniform(k_w1, (C_out, C_in, 1, 1), gain)

    # BatchNorm2d params as initialized by _init_weights (gamma=1, beta=0) and
    # PyTorch defaults for running stats (mean=0, var=1); inference semantics.
    gamma = jnp.ones((C_out,), jnp.float32)
    beta = jnp.zeros((C_out,), jnp.float32)
    rmean = jnp.zeros((C_out,), jnp.float32)
    rvar = jnp.ones((C_out,), jnp.float32)
    bn3 = (gamma, beta, rmean, rvar)
    bn1 = (gamma, beta, rmean, rvar)

    out = repvgg_block_forward(x, w3, w1, bn3, bn1)
    out = jax.block_until_ready(out)

    ref = jax.block_until_ready(_ref_forward(x, w3, w1, bn3, bn1))
    np.testing.assert_allclose(np.asarray(out), np.asarray(ref),
                               rtol=1e-5, atol=1e-5)
    print("KERNEL_OK")
</pallas_src>

<mosaic_0001>
module attributes {stable_mosaic.version = 11 : i64} {
  func.func @_repvgg_kernel(%arg0: i32, %arg1: memref<1x36x256xf32, #tpu.memory_space<vmem>>, %arg2: memref<16x36xf32, #tpu.memory_space<vmem>>, %arg3: memref<16x1xf32, #tpu.memory_space<vmem>>, %arg4: memref<1x8x256xf32, #tpu.memory_space<vmem>>) attributes {dimension_semantics = [#tpu.dimension_semantics<parallel>], iteration_bounds = array<i64: 2>, scalar_prefetch = 0 : i64, scratch_operands = 0 : i64, tpu.core_type = #tpu.core_type<tc>, window_params = [{transform_indices = @transform_0, window_bounds = array<i64: 1, 36, 256>}, {pipeline_mode = #tpu.pipeline_mode<synchronous>, transform_indices = @transform_1, window_bounds = array<i64: 16, 36>}, {pipeline_mode = #tpu.pipeline_mode<synchronous>, transform_indices = @transform_2, window_bounds = array<i64: 16, 1>}, {transform_indices = @transform_3, window_bounds = array<i64: 1, 8, 256>}]} {
    %c0 = arith.constant 0 : index
    %c0_0 = arith.constant 0 : index
    %0 = vector.load %arg2[%c0, %c0_0] : memref<16x36xf32, #tpu.memory_space<vmem>>, vector<16x36xf32>
    %c0_1 = arith.constant 0 : index
    %c0_2 = arith.constant 0 : index
    %c0_3 = arith.constant 0 : index
    %1 = vector.load %arg1[%c0_1, %c0_2, %c0_3] : memref<1x36x256xf32, #tpu.memory_space<vmem>>, vector<1x36x256xf32>
    %2 = vector.shape_cast %1 : vector<1x36x256xf32> to vector<36x256xf32>
    %cst = arith.constant dense<0.000000e+00> : vector<16x256xf32>
    %3 = tpu.matmul %0, %2, %cst {dimension_numbers = #tpu.dot_dimension_numbers<[1], [0], [0], [1], [0, 0, 1, 1], [], []>} : vector<16x36xf32>, vector<36x256xf32>, vector<16x256xf32> -> vector<16x256xf32>
    %c0_4 = arith.constant 0 : index
    %c0_5 = arith.constant 0 : index
    %4 = vector.load %arg3[%c0_4, %c0_5] : memref<16x1xf32, #tpu.memory_space<vmem>>, vector<16x1xf32>
    %5 = vector.broadcast %4 : vector<16x1xf32> to vector<16x256xf32>
    %6 = arith.addf %3, %5 : vector<16x256xf32>
    %7 = arith.negf %6 : vector<16x256xf32>
    %8 = math.exp %7 : vector<16x256xf32>
    %cst_6 = arith.constant 1.000000e+00 : f32
    %9 = vector.broadcast %cst_6 : f32 to vector<16x256xf32>
    %10 = arith.addf %9, %8 : vector<16x256xf32>
    %11 = arith.divf %9, %10 : vector<16x256xf32>
    %12 = arith.mulf %6, %11 : vector<16x256xf32>
    %13 = vector.extract_strided_slice %12 {offsets = [0, 0], sizes = [8, 256], strides = [1, 1]} : vector<16x256xf32> to vector<8x256xf32>
    %14 = vector.extract_strided_slice %12 {offsets = [8, 0], sizes = [8, 256], strides = [1, 1]} : vector<16x256xf32> to vector<8x256xf32>
    %15 = arith.addf %13, %14 : vector<8x256xf32>
    %16 = arith.negf %15 : vector<8x256xf32>
    %17 = math.exp %16 : vector<8x256xf32>
    %cst_7 = arith.constant 1.000000e+00 : f32
    %18 = vector.broadcast %cst_7 : f32 to vector<8x256xf32>
    %19 = arith.addf %18, %17 : vector<8x256xf32>
    %20 = arith.divf %18, %19 : vector<8x256xf32>
    %21 = arith.mulf %15, %20 : vector<8x256xf32>
    %c0_8 = arith.constant 0 : index
    %c0_9 = arith.constant 0 : index
    %c0_10 = arith.constant 0 : index
    %22 = vector.load %arg4[%c0_8, %c0_9, %c0_10] : memref<1x8x256xf32, #tpu.memory_space<vmem>>, vector<1x8x256xf32>
    %23 = vector.shape_cast %22 : vector<1x8x256xf32> to vector<8x256xf32>
    %24 = vector.shape_cast %21 : vector<8x256xf32> to vector<1x8x256xf32>
    tpu.vector_store %arg4[%c0_8, %c0_9, %c0_10], %24 {strides = array<i32>} : memref<1x8x256xf32, #tpu.memory_space<vmem>>, vector<1x8x256xf32>,
    return
  }
  func.func @transform_0(%arg0: i32) -> (i32, i32, i32) {
    %c0_i32 = arith.constant 0 : i32
    %c0_i32_0 = arith.constant 0 : i32
    %c0_i32_1 = arith.constant 0 : i32
    return %arg0, %c0_i32, %c0_i32_0 : i32, i32, i32
  }
  func.func @transform_1(%arg0: i32) -> (i32, i32) {
    %c0_i32 = arith.constant 0 : i32
    %c0_i32_0 = arith.constant 0 : i32
    %c0_i32_1 = arith.constant 0 : i32
    return %c0_i32, %c0_i32_0 : i32, i32
  }
  func.func @transform_2(%arg0: i32) -> (i32, i32) {
    %c0_i32 = arith.constant 0 : i32
    %c0_i32_0 = arith.constant 0 : i32
    %c0_i32_1 = arith.constant 0 : i32
    return %c0_i32, %c0_i32_0 : i32, i32
  }
  func.func @transform_3(%arg0: i32) -> (i32, i32, i32) {
    %c0_i32 = arith.constant 0 : i32
    %c0_i32_0 = arith.constant 0 : i32
    %c0_i32_1 = arith.constant 0 : i32
    return %arg0, %c0_i32, %c0_i32_0 : i32, i32, i32
  }
}

</mosaic_0001>

<llo_original>
// kernel: tpu_custom_call.1
$region0: #{tpu_custom_call.1}
  #allocation0 [shape = 'u32[]', space=smem, size = 0x4, offset = 0x4, fixed_abs, tag = 'smem constant byte address 0x4 - core index']
  #allocation1 [shape = 'u32[72,128]{1,0:T(1,128)}', space=vmem, size = 0x9000, scoped, tag = 'internal scratch']
  %s0 = inlined_call_operand.vmem [shape: f32[2,36,256], index: 0, kind: input, shape index: {}]
  %s1 = inlined_call_operand.vmem [shape: f32[16,36], index: 1, kind: input, shape index: {}]
  %s2 = inlined_call_operand.vmem [shape: f32[16,1], index: 2, kind: input, shape index: {}]
  %s3 = inlined_call_operand.hbm [shape: f32[2,8,256], index: 3, kind: output, shape index: {}]
  %s4 = sld [smem:[#allocation0]]
  $region45: #{tpu_custom_call.1} parent=0
    _
  %s6 = ssub.s32 1, %s4
  %s7 = scalar_select 0, %s6, %s4
  $region1: #{tpu_custom_call.1} parent=0
    #allocation2 [shape = 'u8[16384]{0}', space=vmem, size = 0x4000, scoped, tag = 'output window, operand 0']
    #allocation3 [shape = 's32[2]{0}', space=sflag, size = 0x8, scoped, tag = 'scoped memory for tpu_custom_call.1']
    %8 = vsyncpa [#allocation3], 0
    %s9 = scalar_lea.sflag [#allocation3], 1
    %10 = vsyncpa %s9, 0
    loop: start=0, step=1, limit=4
    $region2: #{tpu_custom_call.1} parent=1 // loop_pre_header
      _
    $region3: #{tpu_custom_call.1} parent=1 // loop_header
      %s12 = sphi 0, %s16
      %p13 = scmp.ge.s32.totalorder %s12, 4
      %s22 = sphi 0, %s24
      %s25 = sphi 0, %s22
      %s26 = sphi 0, %s25
      %s42 = sphi 0, %s26
      %s46 = sphi 0, %s46
      %s48 = sphi 0, %s46
      %s49 = sphi 0, %s48
      %s63 = sphi 0, %s49
      %s67 = sphi 0, %s67
      %s69 = sphi 0, %s67
      %s70 = sphi 0, %s69
      %s84 = sphi 0, %s70
      %s90 = sphi 0, %s92
      %s93 = sphi 0, %s90
      %s94 = sphi 0, %s93
      %s110 = sphi 0, %s94
    $region4: #{tpu_custom_call.1} parent=1 // loop_header_branch
      %15 = sbr.rel (%p13) target = $region8
    $region5: #{tpu_custom_call.1} parent=1 // loop_body
      %s17 = ssub.s32 %s12, 1
      %s18 = ssub.s32 %s12, 2
      %s19 = sadd.s32 %s12, 1
      %s20 = ssub.s32 %s12, %s19
      %p21 = scmp.eq.s32.totalorder %s20, 0
      %s23 = sadd.s32 %s22, 1
      %s24 = scalar_select %p21, %s22, %s23
      %p27 = pneg %p21
      %p28 = scmp.eq.s32.totalorder %s12, 1
      %p29 = por %p27, %p28
      %p30 = scmp.ne.s32.totalorder %s22, %s25
      %p31 = scmp.eq.s32.totalorder %s12, 0
      %p32 = por %p30, %p31
      %p33 = scmp.ne.s32.totalorder %s22, %s25
      %p34 = scmp.eq.s32.totalorder %s17, 1
      %p35 = por %p33, %p34
      %p36 = scmp.ne.s32.totalorder %s25, %s26
      %p37 = scmp.eq.s32.totalorder %s17, 0
      %p38 = por %p36, %p37
      %p39 = scmp.ne.s32.totalorder %s25, %s26
      %p40 = scmp.eq.s32.totalorder %s18, 1
      %p41 = por %p39, %p40
      %p43 = scmp.ne.s32.totalorder %s26, %s42
      %p44 = scmp.eq.s32.totalorder %s18, 0
      %p45 = por %p43, %p44
      %s47 = sadd.s32 %s46, 1
      %p50 = scmp.eq.s32.totalorder %s12, 1
      %p51 = scmp.ne.s32.totalorder %s46, %s48
      %p52 = scmp.eq.s32.totalorder %s12, 0
      %p53 = por %p51, %p52
      %p54 = scmp.ne.s32.totalorder %s46, %s48
      %p55 = scmp.eq.s32.totalorder %s17, 1
      %p56 = por %p54, %p55
      %p57 = scmp.ne.s32.totalorder %s48, %s49
      %p58 = scmp.eq.s32.totalorder %s17, 0
      %p59 = por %p57, %p58
      %p60 = scmp.ne.s32.totalorder %s48, %s49
      %p61 = scmp.eq.s32.totalorder %s18, 1
      %p62 = por %p60, %p61
      %p64 = scmp.ne.s32.totalorder %s49, %s63
      %p65 = scmp.eq.s32.totalorder %s18, 0
      %p66 = por %p64, %p65
      %s68 = sadd.s32 %s67, 1
      %p71 = scmp.eq.s32.totalorder %s12, 1
      %p72 = scmp.ne.s32.totalorder %s67, %s69
      %p73 = scmp.eq.s32.totalorder %s12, 0
      %p74 = por %p72, %p73
      %p75 = scmp.ne.s32.totalorder %s67, %s69
      %p76 = scmp.eq.s32.totalorder %s17, 1
      %p77 = por %p75, %p76
      %p78 = scmp.ne.s32.totalorder %s69, %s70
      %p79 = scmp.eq.s32.totalorder %s17, 0
      %p80 = por %p78, %p79
      %p81 = scmp.ne.s32.totalorder %s69, %s70
      %p82 = scmp.eq.s32.totalorder %s18, 1
      %p83 = por %p81, %p82
      %p85 = scmp.ne.s32.totalorder %s70, %s84
      %p86 = scmp.eq.s32.totalorder %s18, 0
      %p87 = por %p85, %p86
      %s88 = ssub.s32 %s12, %s19
      %p89 = scmp.eq.s32.totalorder %s88, 0
      %s91 = sadd.s32 %s90, 1
      %s92 = scalar_select %p89, %s90, %s91
      %p95 = pneg %p89
      %p96 = scmp.eq.s32.totalorder %s12, 1
      %p97 = por %p95, %p96
      %p98 = scmp.ne.s32.totalorder %s90, %s93
      %p99 = scmp.eq.s32.totalorder %s12, 0
      %p100 = por %p98, %p99
      %p101 = scmp.ne.s32.totalorder %s90, %s93
      %p102 = scmp.eq.s32.totalorder %s17, 1
      %p103 = por %p101, %p102
      %p104 = scmp.ne.s32.totalorder %s93, %s94
      %p105 = scmp.eq.s32.totalorder %s17, 0
      %p106 = por %p104, %p105
      %p107 = scmp.ne.s32.totalorder %s93, %s94
      %p108 = scmp.eq.s32.totalorder %s18, 1
      %p109 = por %p107, %p108
      %p111 = scmp.ne.s32.totalorder %s94, %s110
      %p112 = scmp.eq.s32.totalorder %s18, 0
      %p113 = por %p111, %p112
      %p114 = scmp.le.s32.totalorder 1, %s12
      %p115 = scmp.lt.s32.totalorder %s12, 3
      %p116 = pnand %p114, %p115
      %p117 = pneg %p116
      // Predicated region
      $region9: #{tpu_custom_call.1} parent=5 // pred_check
        _
      $region10: #{tpu_custom_call.1} parent=5 // pred_check_branch
        %119 = sbr.rel (%p116) target = $region12
      $region11: #{tpu_custom_call.1} parent=5 // pred_region
        %s120 = ssub.s32 %s12, 1
        // Predicated region
        $region13: #{tpu_custom_call.1} parent=11 // pred_check
          %p121 = pneg %p59
        $region14: #{tpu_custom_call.1} parent=11 // pred_check_branch
          %123 = sbr.rel (%p121) target = $region16
        $region15: #{tpu_custom_call.1} parent=11 // pred_region
          _
        $region16: #{tpu_custom_call.1} parent=11 // pred_fallthru
          _
        // Predicated region
        $region17: #{tpu_custom_call.1} parent=11 // pred_check
          %p124 = pneg %p80
        $region18: #{tpu_custom_call.1} parent=11 // pred_check_branch
          %126 = sbr.rel (%p124) target = $region20
        $region19: #{tpu_custom_call.1} parent=11 // pred_region
          _
        $region20: #{tpu_custom_call.1} parent=11 // pred_fallthru
          _
      $region12: #{tpu_custom_call.1} parent=5 // pred_fallthru
        _
      %p127 = scmp.lt.s32.totalorder %s12, 2
      // Predicated region
      $region21: #{tpu_custom_call.1} parent=5 // pred_check
        %p128 = pneg %p127
      $region22: #{tpu_custom_call.1} parent=5 // pred_check_branch
        %130 = sbr.rel (%p128) target = $region24
      $region23: #{tpu_custom_call.1} parent=5 // pred_region
        // Predicated region
        $region25: #{tpu_custom_call.1} parent=23 // pred_check
          %p131 = pneg %p32
        $region26: #{tpu_custom_call.1} parent=23 // pred_check_branch
          %133 = sbr.rel (%p131) target = $region28
        $region27: #{tpu_custom_call.1} parent=23 // pred_region
          %p134 = scmp.lt.s32.totalorder %s12, 1
          %s135 = scalar_select %p134, %s12, 1
          %s136 = smul.addr %s135, 10
          %s137 = smul.addr %s136, 8
          %s138 = scalar_lea.vmem %s0, %s137
        $region28: #{tpu_custom_call.1} parent=23 // pred_fallthru
          _
      $region24: #{tpu_custom_call.1} parent=5 // pred_fallthru
        _
      %p139 = scmp.le.s32.totalorder 1, %s12
      %p140 = scmp.lt.s32.totalorder %s12, 3
      %p141 = pnand %p139, %p140
      %p142 = pneg %p141
      // Predicated region
      $region29: #{tpu_custom_call.1} parent=5 // pred_check
        _
      $region30: #{tpu_custom_call.1} parent=5 // pred_check_branch
        %144 = sbr.rel (%p141) target = $region32
      $region31: #{tpu_custom_call.1} parent=5 // pred_region
        %s145 = ssub.s32 %s12, 1
        %p146 = scmp.lt.s32.totalorder %s17, 1
        %s147 = scalar_select %p146, %s17, 1
        %s148 = smul.addr %s147, 10
        %s149 = smul.addr %s148, 8
        %s150 = scalar_lea.vmem %s0, %s149
        %p151 = pneg %p38
        %p152 = pneg %p35
        %p153 = pneg %p59
        %p154 = pneg %p56
        %p155 = pneg %p80
        %p156 = pneg %p77
        %p157 = pneg %p106
        %p158 = pneg %p103
        %s159 = sand.u32 %s93, 1
        %s160 = scalar_lea.sflag [#allocation3], %s159
        %s161 = sand.u32 %s93, 1
        %s162 = smul.addr %s161, 16
        %s163 = scalar_lea.vmem [#allocation2], %s162
        %p164 = scmp.lt.s32.totalorder %s17, 1
        %s165 = scalar_select %p164, %s17, 1
        %s166 = smul.addr %s165, 10
        %s167 = smul.addr %s166, 8
        %s168 = scalar_lea.vmem %s0, %s167
        %v169 = vld [vmem:[%s1] sm:$0xff]
        %v170 = vld [vmem:[%s1 + $0x8] sm:$0xff]
        %v171 = vld [vmem:[%s168] sm:$0xff]
        %v172 = vld [vmem:[%s168 + $0x8] sm:$0xff]
        %v173 = vld [vmem:[%s168 + $0x10] sm:$0xff]
        %v174 = vld [vmem:[%s168 + $0x18] sm:$0xff]
        %v175 = vld [vmem:[%s168 + $0x20] sm:$0xff]
        %v176 = vld [vmem:[%s168 + $0x28] sm:$0xff]
        %v177 = vld [vmem:[%s168 + $0x30] sm:$0xff]
        %v178 = vld [vmem:[%s168 + $0x38] sm:$0xff]
        %v179 = vld [vmem:[%s168 + $0x40] sm:$0xf]
        %v180 = vld [vmem:[%s168 + $0x48] sm:$0xf]
        %v181 = vld [vmem:[%s2] sm:$0xff]
        %v182 = vld [vmem:[%s2 + $0x8] sm:$0xff]
        %184 = vset.pattern.permute.xlu0 0
        %185 = vperm.xlu0 %184, %v181
        %v186 = vpop.permute.xlu0 %185
        %189 = vset.pattern.permute.xlu0 0
        %190 = vperm.xlu0 %189, %v182
        %v191 = vpop.permute.xlu0 %190
        %vm193 = vcmask 293888
        %v195 = vsel %vm193, %v169, 0
        %v198 = vsel %vm193, %v170, 0
        %vm200 = vcmask 1043456
        %v202 = vsel %vm200, %v179, 0
        %v205 = vsel %vm200, %v180, 0
        %207 = vmatpush.msra.mxu0 0.0
        %208 = vmatpush.msra.mxu0 0.0
        %209 = vmatpush.msra.mxu0 0.0
        %210 = vmatpush.msra.mxu0 0.0
        %211 = vmatpush.msra.mxu0 0.0
        %212 = vmatpush.msra.mxu0 0.0
        %213 = vmatpush.msra.mxu0 0.0
        %214 = vmatpush.msra.mxu0 0.0
        %215 = vmatpush.msra.mxu0 0.0
        %216 = vmatpush.msra.mxu0 0.0
        %217 = vmatpush.msra.mxu0 0.0
        %218 = vmatpush.msra.mxu0 %v202
        %219 = vmatpush.msra.mxu0 %v177
        %220 = vmatpush.msra.mxu0 %v175
        %221 = vmatpush.msra.mxu0 %v173
        %222 = vmatpush.msra.mxu0 %v171
        %223 = vmatmul.f32.gmra.mxu0 %v195
        %v224 = vpop.f32.mrf.mxu0
        %v225 = vadd.f32 %v186, %v224
        %226 = vmatmul.f32.gmra.mxu0 %v198
        %v227 = vpop.f32.mrf.mxu0
        %v228 = vadd.f32 %v191, %v227
        %229 = vdwg.mxu0
        %230 = vmatpush.msra.mxu0 0.0
        %231 = vmatpush.msra.mxu0 0.0
        %232 = vmatpush.msra.mxu0 0.0
        %233 = vmatpush.msra.mxu0 0.0
        %234 = vmatpush.msra.mxu0 0.0
        %235 = vmatpush.msra.mxu0 0.0
        %236 = vmatpush.msra.mxu0 0.0
        %237 = vmatpush.msra.mxu0 0.0
        %238 = vmatpush.msra.mxu0 0.0
        %239 = vmatpush.msra.mxu0 0.0
        %240 = vmatpush.msra.mxu0 0.0
        %241 = vmatpush.msra.mxu0 %v205
        %242 = vmatpush.msra.mxu0 %v178
        %243 = vmatpush.msra.mxu0 %v176
        %244 = vmatpush.msra.mxu0 %v174
        %245 = vmatpush.msra.mxu0 %v172
        %246 = vmatmul.f32.gmra.mxu0 %v195
        %v247 = vpop.f32.mrf.mxu0
        %v248 = vadd.f32 %v186, %v247
        %249 = vmatmul.f32.gmra.mxu0 %v198
        %v250 = vpop.f32.mrf.mxu0
        %v251 = vadd.f32 %v191, %v250
        %252 = vdwg.mxu0
        %v253 = vxor.u32 %v225, 2147483648
        %v254 = vxor.u32 %v248, 2147483648
        %v255 = vxor.u32 %v228, 2147483648
        %v256 = vxor.u32 %v251, 2147483648
        %v257 = vmul.f32 %v253, 1.442695
        %v258 = vpow.pop %v257
        %v259 = vmul.f32 %v254, 1.442695
        %v260 = vpow.pop %v259
        %v261 = vmul.f32 %v255, 1.442695
        %v262 = vpow.pop %v261
        %v263 = vmul.f32 %v256, 1.442695
        %v264 = vpow.pop %v263
        %v265 = vadd.f32 %v258, 1.0
        %v266 = vadd.f32 %v260, 1.0
        %v267 = vadd.f32 %v262, 1.0
        %v268 = vadd.f32 %v264, 1.0
        %v269 = vrcp.pop %v265
        %v270 = vmul.f32 %v265, %v269
        %v271 = vsub.f32 1.0, %v270
        %v272 = vmul.f32 %v269, %v271
        %v273 = vadd.f32 %v269, %v272
        %vm274 = vweird.f32 %v265
        %vm275 = vweird.f32 %v269
        %vm276 = vmor %vm274, %vm275
        %v277 = vsel %vm276, %v269, %v273
        %v278 = vand.u32 2147483647, %v265
        %vm279 = vcmp.eq.f32.partialorder %v278, 8.507059e+37
        %v280 = vand.u32 %v265, 2147483648
        %v281 = vor.u32 1.1754944e-38, %v280
        %v282 = vsel %vm279, %v281, %v277
        %v283 = vmul.f32 1.0, %v282
        %v284 = vrcp.pop %v266
        %v285 = vmul.f32 %v266, %v284
        %v286 = vsub.f32 1.0, %v285
        %v287 = vmul.f32 %v284, %v286
        %v288 = vadd.f32 %v284, %v287
        %vm289 = vweird.f32 %v266
        %vm290 = vweird.f32 %v284
        %vm291 = vmor %vm289, %vm290
        %v292 = vsel %vm291, %v284, %v288
        %v293 = vand.u32 2147483647, %v266
        %vm294 = vcmp.eq.f32.partialorder %v293, 8.507059e+37
        %v295 = vand.u32 %v266, 2147483648
        %v296 = vor.u32 1.1754944e-38, %v295
        %v297 = vsel %vm294, %v296, %v292
        %v298 = vmul.f32 1.0, %v297
        %v299 = vrcp.pop %v267
        %v300 = vmul.f32 %v267, %v299
        %v301 = vsub.f32 1.0, %v300
        %v302 = vmul.f32 %v299, %v301
        %v303 = vadd.f32 %v299, %v302
        %vm304 = vweird.f32 %v267
        %vm305 = vweird.f32 %v299
        %vm306 = vmor %vm304, %vm305
        %v307 = vsel %vm306, %v299, %v303
        %v308 = vand.u32 2147483647, %v267
        %vm309 = vcmp.eq.f32.partialorder %v308, 8.507059e+37
        %v310 = vand.u32 %v267, 2147483648
        %v311 = vor.u32 1.1754944e-38, %v310
        %v312 = vsel %vm309, %v311, %v307
        %v313 = vmul.f32 1.0, %v312
        %v314 = vrcp.pop %v268
        %v315 = vmul.f32 %v268, %v314
        %v316 = vsub.f32 1.0, %v315
        %v317 = vmul.f32 %v314, %v316
        %v318 = vadd.f32 %v314, %v317
        %vm319 = vweird.f32 %v268
        %vm320 = vweird.f32 %v314
        %vm321 = vmor %vm319, %vm320
        %v322 = vsel %vm321, %v314, %v318
        %v323 = vand.u32 2147483647, %v268
        %vm324 = vcmp.eq.f32.partialorder %v323, 8.507059e+37
        %v325 = vand.u32 %v268, 2147483648
        %v326 = vor.u32 1.1754944e-38, %v325
        %v327 = vsel %vm324, %v326, %v322
        %v328 = vmul.f32 1.0, %v327
        %v329 = vmul.f32 %v225, %v283
        %v330 = vmul.f32 %v248, %v298
        %v331 = vmul.f32 %v228, %v313
        %v332 = vmul.f32 %v251, %v328
        %v333 = vadd.f32 %v329, %v331
        %v334 = vadd.f32 %v330, %v332
        %v335 = vxor.u32 %v333, 2147483648
        %v336 = vxor.u32 %v334, 2147483648
        %v337 = vmul.f32 %v335, 1.442695
        %v338 = vpow.pop %v337
        %v339 = vmul.f32 %v336, 1.442695
        %v340 = vpow.pop %v339
        %v341 = vadd.f32 %v338, 1.0
        %v342 = vadd.f32 %v340, 1.0
        %v343 = vrcp.pop %v341
        %v344 = vmul.f32 %v341, %v343
        %v345 = vsub.f32 1.0, %v344
        %v346 = vmul.f32 %v343, %v345
        %v347 = vadd.f32 %v343, %v346
        %vm348 = vweird.f32 %v341
        %vm349 = vweird.f32 %v343
        %vm350 = vmor %vm348, %vm349
        %v351 = vsel %vm350, %v343, %v347
        %v352 = vand.u32 2147483647, %v341
        %vm353 = vcmp.eq.f32.partialorder %v352, 8.507059e+37
        %v354 = vand.u32 %v341, 2147483648
        %v355 = vor.u32 1.1754944e-38, %v354
        %v356 = vsel %vm353, %v355, %v351
        %v357 = vmul.f32 1.0, %v356
        %v358 = vrcp.pop %v342
        %v359 = vmul.f32 %v342, %v358
        %v360 = vsub.f32 1.0, %v359
        %v361 = vmul.f32 %v358, %v360
        %v362 = vadd.f32 %v358, %v361
        %vm363 = vweird.f32 %v342
        %vm364 = vweird.f32 %v358
        %vm365 = vmor %vm363, %vm364
        %v366 = vsel %vm365, %v358, %v362
        %v367 = vand.u32 2147483647, %v342
        %vm368 = vcmp.eq.f32.partialorder %v367, 8.507059e+37
        %v369 = vand.u32 %v342, 2147483648
        %v370 = vor.u32 1.1754944e-38, %v369
        %v371 = vsel %vm368, %v370, %v366
        %v372 = vmul.f32 1.0, %v371
        %v373 = vmul.f32 %v333, %v357
        %v374 = vmul.f32 %v334, %v372
        %375 = vst [vmem:[%s163] sm:$0xff] %v373
        %376 = vst [vmem:[%s163 + $0x8] sm:$0xff] %v374
        %s377 = sand.u32 %s93, 1
        %s378 = scalar_lea.sflag [#allocation3], %s377
        %s379 = sand.u32 %s93, 1
        %s380 = smul.addr %s379, 16
        %s381 = scalar_lea.vmem [#allocation2], %s380
        // Predicated region
        $region33: #{tpu_custom_call.1} parent=31 // pred_check
          %p382 = pneg %p103
        $region34: #{tpu_custom_call.1} parent=31 // pred_check_branch
          %384 = sbr.rel (%p382) target = $region36
        $region35: #{tpu_custom_call.1} parent=31 // pred_region
          %386 = vsyncadd %s378, 0
          %s387 = smul.addr %s17, 2
          %s388 = smul.addr %s387, 8
          %s389 = scalar_lea.hbm %s3, %s388
          %s391 = sshll.u32 %s381, 4
          %s392 = int_to_ptr.vmem [resolvable:$true] %s391
          %s393 = sshll.u32 %s389, 4
          %s394 = int_to_ptr.hbm [resolvable:$true] %s393
          %396 = dma.vmem_to_hbm [thread:$0]  %s392, 256, %s394, %s378
        $region36: #{tpu_custom_call.1} parent=31 // pred_fallthru
          _
      $region32: #{tpu_custom_call.1} parent=5 // pred_fallthru
        _
      %p397 = scmp.le.s32.totalorder 2, %s12
      // Predicated region
      $region37: #{tpu_custom_call.1} parent=5 // pred_check
        %p398 = pneg %p397
      $region38: #{tpu_custom_call.1} parent=5 // pred_check_branch
        %400 = sbr.rel (%p398) target = $region40
      $region39: #{tpu_custom_call.1} parent=5 // pred_region
        %s401 = ssub.s32 %s12, 2
        // Predicated region
        $region41: #{tpu_custom_call.1} parent=39 // pred_check
          %p402 = pneg %p109
        $region42: #{tpu_custom_call.1} parent=39 // pred_check_branch
          %404 = sbr.rel (%p402) target = $region44
        $region43: #{tpu_custom_call.1} parent=39 // pred_region
          %s405 = sand.u32 %s94, 1
          %s406 = scalar_lea.sflag [#allocation3], %s405
          %s407 = sand.u32 %s94, 1
          %s408 = smul.addr %s407, 16
          %s409 = scalar_lea.vmem [#allocation2], %s408
          %411 = dma.done %s406, 256
        $region44: #{tpu_custom_call.1} parent=39 // pred_fallthru
          _
      $region40: #{tpu_custom_call.1} parent=5 // pred_fallthru
        _
    $region6: #{tpu_custom_call.1} parent=1 // loop_footer
      %s16 = sadd.s32 1, %s12
    $region7: #{tpu_custom_call.1} parent=1 // loop_footer_branch
      %11 = sbr.rel target = $region3
    $region8: #{tpu_custom_call.1} parent=1 // loop_exit
      _
    %412 = vsyncpa [#allocation3], 1
    %s413 = scalar_lea.sflag [#allocation3], 1
    %414 = vsyncpa %s413, 1

</llo_original>
